<compile_context>
chip_gen: v5e
topology: v5e:2x2
jax: 0.10.0
libtpu: 0.0.40
codegen_flags: <defaults>
</compile_context>

<pallas_src>
import jax
import jax.numpy as jnp
from jax import lax
from jax.experimental import pallas as pl
from jax.experimental.pallas import tpu as pltpu


_LANES = 128            # lane width of the 2-D view: one vreg row = 32 quats
_MAX_BLOCK_ROWS = 4096  # (4096, 128) f32 = 2 MiB per pipeline buffer


def _quat_norm_kernel(x_ref, o_ref):
    x = x_ref[...].astype(jnp.float32)          # (tm, 128)
    c = x.shape[1]
    sq = x * x

    # Neighbour-selection masks for the 2-stage group-of-4 butterfly.
    # Built from a single (1, c) lane iota (one vreg), so the two iota rolls
    # and XORs cost ~nothing; the int32 row is broadcast along sublanes and
    # compared at full shape (cheap VALU).  The XOR trick keeps the selection
    # correct for either rotate-direction convention of pltpu.roll.
    row = lax.broadcasted_iota(jnp.int32, (1, c), dimension=1)
    d1 = pltpu.roll(row, 1, axis=1) ^ row       # == 1 where roll-by-1 hits the XOR-1 partner
    d2 = pltpu.roll(row, 2, axis=1) ^ row       # == 2 where roll-by-2 hits the XOR-2 partner
    m1 = jnp.broadcast_to(d1, sq.shape) == 1
    m2 = jnp.broadcast_to(d2, sq.shape) == 2

    # Stage 1: pair sums — lane j gets sq[j] + sq[j^1].
    pair = sq + jnp.where(m1,
                          pltpu.roll(sq, 1, axis=1),
                          pltpu.roll(sq, c - 1, axis=1))
    # Stage 2: quad sums — lane j gets the full sum over its quaternion.
    sumsq = pair + jnp.where(m2,
                             pltpu.roll(pair, 2, axis=1),
                             pltpu.roll(pair, c - 2, axis=1))

    coe = lax.rsqrt(sumsq)                      # = sqrt(1 / sumsq), single EUP op
    # Re-read the input tile for the final multiply rather than keeping the
    # first load live across the whole butterfly (fewer live block temps).
    o_ref[...] = (x_ref[...].astype(jnp.float32) * coe).astype(o_ref.dtype)


def quat_activation(x, *, max_block_rows=_MAX_BLOCK_ROWS, lanes=_LANES):
    """L2-normalize quaternions stored on the last axis (size 4) of `x`."""
    if x.shape[-1] != 4:
        # TODO(synk): the lane-dense butterfly is specialized to groups of 4;
        # other trailing sizes fall back to plain JAX.
        s = jnp.sum(jnp.square(x.astype(jnp.float32)), axis=-1, keepdims=True)
        return (x.astype(jnp.float32) * lax.rsqrt(s)).astype(x.dtype)

    orig_shape = x.shape
    n = x.size
    flat = x.reshape(-1)                        # metadata only, no copy

    # The lane-dense 2-D view only needs the flat length to be a multiple of
    # 128 (= 32 whole quaternions); row raggedness vs. the block size is
    # handled by Pallas' out-of-bounds edge-block semantics (OOB rows are
    # read as garbage but never written back).  Padding with 1s keeps the
    # padded whole quaternions finite (n and 128 are both multiples of 4).
    pad = (-n) % lanes
    if pad:
        # TODO(synk): for unaligned sizes this pad + the final slice are two
        # extra HBM passes; a fully in-kernel tail mask would need manual DMA
        # from the non-reshapeable flat buffer.
        flat = jnp.pad(flat, (0, pad), constant_values=1)
    rows = flat.size // lanes
    x2d = flat.reshape(rows, lanes)             # metadata only, no copy

    # Block rows: multiple of 8 (sublane tiling), capped at ~2 MiB/buffer,
    # and chosen so the grid has >= 2 steps whenever possible so the single
    # "parallel" axis can split across v7x's two TensorCores.
    if rows <= 8:
        tm = rows                               # block == full dim, constraint waived
    else:
        tm = min(max_block_rows, pl.cdiv(rows, 2))
        tm = max(8, (tm // 8) * 8)
    grid = (pl.cdiv(rows, tm),)

    n_elems = rows * lanes
    itemsize = jnp.dtype(x.dtype).itemsize
    cost = pl.CostEstimate(
        flops=8 * n_elems,                      # square, 2 adds, selects, final mul
        transcendentals=n_elems,                # one rsqrt per lane
        bytes_accessed=2 * n_elems * itemsize,  # stream in + stream out
    )

    out2d = pl.pallas_call(
        _quat_norm_kernel,
        out_shape=jax.ShapeDtypeStruct((rows, lanes), x.dtype),
        grid_spec=pltpu.PrefetchScalarGridSpec(
            num_scalar_prefetch=0,
            grid=grid,
            in_specs=[pl.BlockSpec((tm, lanes), lambda i: (i, 0))],
            out_specs=pl.BlockSpec((tm, lanes), lambda i: (i, 0)),
        ),
        compiler_params=pltpu.CompilerParams(
            dimension_semantics=("parallel",),
            # Explicit: v5e's scoped default is only 16 MiB; 4 x 2 MiB
            # pipeline buffers + full-block temporaries need ~20 MiB.
            vmem_limit_bytes=32 * 1024 * 1024,
        ),
        cost_estimate=cost,
    )(x2d)

    out = out2d.reshape(-1)
    if pad:
        out = out[:n]
    return out.reshape(orig_shape)


def _ref(x):
    return x * jnp.sqrt(1.0 / jnp.sum(x * x, axis=-1, keepdims=True))


if __name__ == "__main__":
    # batch=2, seq=8, quaternion dim=4
    x = jax.random.normal(jax.random.PRNGKey(0), (2, 8, 4), dtype=jnp.float32)
    out = quat_activation(x)
    jax.block_until_ready(out)
    assert out.shape == x.shape and out.dtype == x.dtype
    assert jnp.allclose(out, _ref(x), atol=1e-6, rtol=1e-5)

    # Ragged shape exercising the 128-element pad path + an OOB edge block.
    x2 = jax.random.normal(jax.random.PRNGKey(1), (3, 7, 5, 4), dtype=jnp.float32)
    out2 = quat_activation(x2)
    jax.block_until_ready(out2)
    assert jnp.allclose(out2, _ref(x2), atol=1e-6, rtol=1e-5)

    # Shape large enough to get >= 2 grid steps (rows split for dual-TC).
    x3 = jax.random.normal(jax.random.PRNGKey(2), (8, 512, 4), dtype=jnp.float32)
    out3 = quat_activation(x3)
    jax.block_until_ready(out3)
    assert jnp.allclose(out3, _ref(x3), atol=1e-6, rtol=1e-5)

    print("KERNEL_OK")
</pallas_src>

<mosaic_0001>
module attributes {stable_mosaic.version = 11 : i64} {
  func.func @_quat_norm_kernel(%arg0: i32, %arg1: memref<1x128xf32, #tpu.memory_space<vmem>>, %arg2: memref<1x128xf32, #tpu.memory_space<vmem>>) attributes {dimension_semantics = [#tpu.dimension_semantics<parallel>], iteration_bounds = array<i64: 1>, scalar_prefetch = 0 : i64, scratch_operands = 0 : i64, tpu.core_type = #tpu.core_type<tc>, window_params = [{transform_indices = @transform_0, window_bounds = array<i64: 1, 128>}, {transform_indices = @transform_1, window_bounds = array<i64: 1, 128>}]} {
    %c0 = arith.constant 0 : index
    %c0_0 = arith.constant 0 : index
    %0 = vector.load %arg1[%c0, %c0_0] : memref<1x128xf32, #tpu.memory_space<vmem>>, vector<1x128xf32>
    %1 = arith.mulf %0, %0 : vector<1x128xf32>
    %2 = tpu.iota {dimensions = array<i32: 1>} : vector<1x128xi32>
    %c1_i32 = arith.constant 1 : i32
    %3 = tpu.dynamic_rotate %2 by %c1_i32 dim 1 : vector<1x128xi32>, i32 -> vector<1x128xi32>
    %4 = arith.xori %3, %2 : vector<1x128xi32>
    %c2_i32 = arith.constant 2 : i32
    %5 = tpu.dynamic_rotate %2 by %c2_i32 dim 1 : vector<1x128xi32>, i32 -> vector<1x128xi32>
    %6 = arith.xori %5, %2 : vector<1x128xi32>
    %c1_i32_1 = arith.constant 1 : i32
    %7 = vector.broadcast %c1_i32_1 : i32 to vector<1x128xi32>
    %8 = arith.cmpi eq, %4, %7 : vector<1x128xi32>
    %c2_i32_2 = arith.constant 2 : i32
    %9 = vector.broadcast %c2_i32_2 : i32 to vector<1x128xi32>
    %10 = arith.cmpi eq, %6, %9 : vector<1x128xi32>
    %c1_i32_3 = arith.constant 1 : i32
    %11 = tpu.dynamic_rotate %1 by %c1_i32_3 dim 1 : vector<1x128xf32>, i32 -> vector<1x128xf32>
    %c127_i32 = arith.constant 127 : i32
    %12 = tpu.dynamic_rotate %1 by %c127_i32 dim 1 : vector<1x128xf32>, i32 -> vector<1x128xf32>
    %13 = arith.select %8, %11, %12 : vector<1x128xi1>, vector<1x128xf32>
    %14 = arith.addf %1, %13 : vector<1x128xf32>
    %c2_i32_4 = arith.constant 2 : i32
    %15 = tpu.dynamic_rotate %14 by %c2_i32_4 dim 1 : vector<1x128xf32>, i32 -> vector<1x128xf32>
    %c126_i32 = arith.constant 126 : i32
    %16 = tpu.dynamic_rotate %14 by %c126_i32 dim 1 : vector<1x128xf32>, i32 -> vector<1x128xf32>
    %17 = arith.select %10, %15, %16 : vector<1x128xi1>, vector<1x128xf32>
    %18 = arith.addf %14, %17 : vector<1x128xf32>
    %19 = math.rsqrt %18 : vector<1x128xf32>
    %c0_5 = arith.constant 0 : index
    %c0_6 = arith.constant 0 : index
    %20 = vector.load %arg1[%c0_5, %c0_6] : memref<1x128xf32, #tpu.memory_space<vmem>>, vector<1x128xf32>
    %21 = arith.mulf %20, %19 : vector<1x128xf32>
    %c0_7 = arith.constant 0 : index
    %c0_8 = arith.constant 0 : index
    %22 = vector.load %arg2[%c0_7, %c0_8] : memref<1x128xf32, #tpu.memory_space<vmem>>, vector<1x128xf32>
    tpu.vector_store %arg2[%c0_7, %c0_8], %21 {strides = array<i32>} : memref<1x128xf32, #tpu.memory_space<vmem>>, vector<1x128xf32>,
    return
  }
  func.func @transform_0(%arg0: i32) -> (i32, i32) {
    %c0_i32 = arith.constant 0 : i32
    %c0_i32_0 = arith.constant 0 : i32
    return %arg0, %c0_i32 : i32, i32
  }
  func.func @transform_1(%arg0: i32) -> (i32, i32) {
    %c0_i32 = arith.constant 0 : i32
    %c0_i32_0 = arith.constant 0 : i32
    return %arg0, %c0_i32 : i32, i32
  }
}

</mosaic_0001>

<llo_original>
// kernel: tpu_custom_call.1
$region0: #{tpu_custom_call.1}
  #allocation0 [shape = 'u32[]', space=smem, size = 0x4, offset = 0x4, fixed_abs, tag = 'smem constant byte address 0x4 - core index']
  #allocation1 [shape = 'u32[72,128]{1,0:T(1,128)}', space=vmem, size = 0x9000, scoped, tag = 'internal scratch']
  %s0 = inlined_call_operand.hbm [shape: f32[1,128], index: 0, kind: input, shape index: {}]
  %s1 = inlined_call_operand.hbm [shape: f32[1,128], index: 1, kind: output, shape index: {}]
  %s2 = sld [smem:[#allocation0]]
  $region18: #{tpu_custom_call.1} parent=0
    _
  %s4 = ssub.s32 1, %s2
  %s5 = scalar_select 0, %s4, %s2
  $region1: #{tpu_custom_call.1} parent=0
    #allocation2 [shape = 'u8[512]{0}', space=vmem, size = 0x400, scoped, tag = 'input window, operand 0, single buffered']
    #allocation3 [shape = 's32[1]{0}', space=sflag, size = 0x4, scoped, tag = 'scoped memory for tpu_custom_call.1']
    #allocation4 [shape = 's32[1]{0}', space=sflag, size = 0x4, scoped, tag = 'scoped memory for tpu_custom_call.1']
    #allocation5 [shape = 'u8[512]{0}', space=vmem, size = 0x400, scoped, tag = 'output window, operand 0, single buffered']
    %6 = vsyncpa [#allocation3], 0
    %7 = vsyncpa [#allocation4], 0
    // Predicated region
    $region2: #{tpu_custom_call.1} parent=1 // pred_check
      _
    $region3: #{tpu_custom_call.1} parent=1 // pred_check_branch
      %9 = sbr.rel (0) target = $region5
    $region4: #{tpu_custom_call.1} parent=1 // pred_region
      %11 = vsyncadd [#allocation3], 0
      %s13 = sshll.u32 %s0, 4
      %s14 = int_to_ptr.hbm [resolvable:$true] %s13
      %s15 = sshll.u32 [#allocation2], 4
      %s16 = int_to_ptr.vmem [resolvable:$true] %s15
      %18 = dma.hbm_to_vmem [thread:$0]  %s14, 16, %s16, [#allocation3]
    $region5: #{tpu_custom_call.1} parent=1 // pred_fallthru
      _
    // Predicated region
    $region6: #{tpu_custom_call.1} parent=1 // pred_check
      _
    $region7: #{tpu_custom_call.1} parent=1 // pred_check_branch
      %20 = sbr.rel (0) target = $region9
    $region8: #{tpu_custom_call.1} parent=1 // pred_region
      %22 = dma.done [#allocation3], 16
    $region9: #{tpu_custom_call.1} parent=1 // pred_fallthru
      _
    %v23 = vld [vmem:[#allocation2] sm:$0x1]
    %v24 = vmul.f32 %v23, %v23
    %v25 = vlaneseq
    %v26 = vand.u32 %v25, 127
    %27 = vrot.lane.b32.xlu0 %v26, 1
    %v28 = vpop.permute.xlu0 %27
    %v29 = vxor.u32 %v28, %v26
    %30 = vrot.lane.b32.xlu0 %v26, 2
    %v31 = vpop.permute.xlu0 %30
    %v32 = vxor.u32 %v31, %v26
    %vm33 = vcmp.eq.s32.totalorder %v29, 1
    %vm34 = vcmp.eq.s32.totalorder %v32, 2
    %35 = vrot.lane.b32.xlu0 %v24, 1
    %v36 = vpop.permute.xlu0 %35
    %37 = vrot.lane.b32.xlu0 %v24, 127
    %v38 = vpop.permute.xlu0 %37
    %v39 = vsel %vm33, %v36, %v38
    %v40 = vadd.f32 %v24, %v39
    %41 = vrot.lane.b32.xlu0 %v40, 2
    %v42 = vpop.permute.xlu0 %41
    %43 = vrot.lane.b32.xlu0 %v40, 126
    %v44 = vpop.permute.xlu0 %43
    %v45 = vsel %vm34, %v42, %v44
    %v46 = vadd.f32 %v40, %v45
    %v47 = vrsqrt.pop %v46
    %v48 = vmul.f32 %v47, %v46
    %v49 = vmul.f32 %v48, %v47
    %v50 = vmul.f32 0.5, %v49
    %v51 = vsub.f32 1.5, %v50
    %v52 = vmul.f32 %v47, %v51
    %vm53 = vweird.f32 %v46
    %vm54 = vweird.f32 %v47
    %vm55 = vmor %vm53, %vm54
    %v56 = vsel %vm55, %v47, %v52
    %v57 = vmul.f32 %v23, %v56
    %58 = vst [vmem:[#allocation5] sm:$0x1] %v57
    // Predicated region
    $region10: #{tpu_custom_call.1} parent=1 // pred_check
      _
    $region11: #{tpu_custom_call.1} parent=1 // pred_check_branch
      %60 = sbr.rel (0) target = $region13
    $region12: #{tpu_custom_call.1} parent=1 // pred_region
      %62 = vsyncadd [#allocation4], 0
      %s64 = sshll.u32 [#allocation5], 4
      %s65 = int_to_ptr.vmem [resolvable:$true] %s64
      %s66 = sshll.u32 %s1, 4
      %s67 = int_to_ptr.hbm [resolvable:$true] %s66
      %69 = dma.vmem_to_hbm [thread:$0]  %s65, 16, %s67, [#allocation4]
    $region13: #{tpu_custom_call.1} parent=1 // pred_fallthru
      _
    // Predicated region
    $region14: #{tpu_custom_call.1} parent=1 // pred_check
      _
    $region15: #{tpu_custom_call.1} parent=1 // pred_check_branch
      %71 = sbr.rel (0) target = $region17
    $region16: #{tpu_custom_call.1} parent=1 // pred_region
      %73 = dma.done [#allocation4], 16
    $region17: #{tpu_custom_call.1} parent=1 // pred_fallthru
      _
    %74 = vsyncpa [#allocation3], 1
    %75 = vsyncpa [#allocation4], 1

</llo_original>
